<compile_context>
chip_gen: v5e
topology: v5e:2x2
jax: 0.10.0
libtpu: 0.0.40
codegen_flags: <defaults>
</compile_context>

<pallas_src>
import functools

import jax
import jax.numpy as jnp
from jax import lax
from jax.experimental import pallas as pl
from jax.experimental.pallas import tpu as pltpu


def _round_up(x, m):
    return (x + m - 1) // m * m


# ---------------------------------------------------------------------------
# Pallas kernel: 3 accumulating MXU dots (one per kd tap plane).  The 3 kh
# taps, 3 kw taps and C input channels are pre-folded into the K dimension
# (K = 9C, ordered (kh, kw, cin)), so every dot is a dense
# (TM, 9C) x (9C, Coutp) GEMM -- no in-kernel slicing/reshapes/transposes.
# ---------------------------------------------------------------------------
def _downconv_kernel(x0_ref, x1_ref, w_ref, o_ref):
    # x0_ref: (2, TM, 9C)  parity-depth index do   (pd=0 -> kd=0, pd=1 -> kd=1)
    # x1_ref: (TM, 9C)     parity-depth index do+1 (pd=0 -> kd=2)
    # w_ref : (3, 9C, Coutp)  per-kd weight slab, K ordered (kh, kw, cin)
    # o_ref : (TM, Coutp)     out_dtype (default bf16), f32 accumulation
    acc = jnp.dot(x0_ref[0], w_ref[0], preferred_element_type=jnp.float32)
    acc = acc + jnp.dot(x0_ref[1], w_ref[1], preferred_element_type=jnp.float32)
    acc = acc + jnp.dot(x1_ref[...], w_ref[2], preferred_element_type=jnp.float32)
    o_ref[...] = acc.astype(o_ref.dtype)


def _vmem_capacity_bytes():
    try:
        return int(pltpu.get_tpu_info().vmem_capacity_bytes)
    except Exception:            # conservative fallback (v7x per-TC VMEM)
        return 64 * 1024 * 1024


def _choose_tiling(Ho, Wo, C, Coutp):
    """Hardware-aware (TM, Mpad, vmem_limit).

    TM (rows of the flattened ho*Wo+wo axis per grid step) is always a
    multiple of 8 sublanes, sized from the per-generation VMEM capacity minus
    the resident (double-buffered) weight slab.  The row count is zero-padded
    up to a multiple of TM (padding sliced off in the epilogue), so awkward
    Ho/Wo can never force an over-budget single tile.
    """
    Mtot = Ho * Wo
    K9 = 9 * C
    vmem_cap = _vmem_capacity_bytes()
    # 75% of physical: ~48 MiB on v7x (64 MiB/TC), ~96 MiB on v5e/v6e (128 MiB)
    vmem_limit = vmem_cap * 3 // 4
    # resident weight: (3, 9C, Coutp) bf16, x2 pipeline buffers
    w_bytes = 2 * 3 * K9 * Coutp * 2
    # per-row VMEM cost: x0 (2 rows of K9) + x1 (1 row of K9) bf16, each
    # double-buffered, + out (double-buffered) + f32 accumulator temp
    per_row = 3 * K9 * 2 * 2 + Coutp * 2 * 2 + Coutp * 4
    budget = max(vmem_limit - w_bytes - (4 << 20), 1 << 20)   # 4 MiB slack
    max_rows = max(8, (budget // per_row) // 8 * 8)
    TM = min(_round_up(Mtot, 8), max_rows)
    Mpad = _round_up(Mtot, TM)
    # TODO(synk): for very large C (>= ~512 on v7x) also tile Coutp over a 4th
    # grid axis instead of keeping the full weight slab resident.
    return TM, Mpad, vmem_limit


# ---------------------------------------------------------------------------
# Wrapper reproducing unetDownSample.forward (down_type='conv')
# ---------------------------------------------------------------------------
@functools.partial(jax.jit,
                   static_argnames=("p_mode", "channels_last", "out_dtype"))
def unet_downsample_conv(x, weight, p_mode="same", channels_last=False,
                         out_dtype=jnp.bfloat16):
    """
    x:      (N, C, D, H, W)  (NCDHW, PyTorch convention)
    weight: (C, C, 3, 3, 3)  (OIDHW, PyTorch Conv3d weight)
    Returns
      channels_last=False: (N, C, Do, Ho, Wo)   (PyTorch layout)
      channels_last=True : (N, Do, Ho, Wo, C)   (skips the epilogue transpose
                                                  so a consumer can fuse it)
    """
    if p_mode not in ("same", "sym"):
        raise ValueError(p_mode)
    N, C, D, H, W = x.shape
    assert weight.shape == (C, C, 3, 3, 3)

    Do = (D - 1) // 2 + 1
    Ho = (H - 1) // 2 + 1
    Wo = (W - 1) // 2 + 1

    # --- pad (effective pad = 1 each side; zero for 'same', replicate for 'sym')
    pad_mode = "constant" if p_mode == "same" else "edge"
    xb = x.astype(jnp.bfloat16)          # cast early: halves rearrangement bytes
    xp = jnp.pad(xb, ((0, 0), (0, 0), (1, 1), (1, 1), (1, 1)), mode=pad_mode)

    # Parity-split invariant (ties the index_maps to the tap layout):
    #   output depth do convolves padded depths 2*do + kd, kd in {0,1,2}:
    #     kd=0 -> (di=do,   pd=0)   x0 block, row 0
    #     kd=1 -> (di=do,   pd=1)   x0 block, row 1
    #     kd=2 -> (di=do+1, pd=0)   x1 block (pd squeezed at index 0)
    #   so di ranges over 0..Do and the padded depth must be exactly 2*(Do+1).
    #   For odd D the final slot (di=Do, pd=1) is zero-filled and is NEVER
    #   read by a valid (do, kd): do <= Do-1 touches (di=Do, pd=0) only.
    Dp = 2 * (Do + 1)
    extra_d = Dp - (D + 2)
    assert 0 <= extra_d <= 1
    if extra_d > 0:
        xp = jnp.pad(xp, ((0, 0), (0, 0), (0, extra_d), (0, 0), (0, 0)))

    # --- fold (kh, kw) taps into K, parity-split the depth axis.
    # xflat[n, di, pd, ho*Wo+wo, (kh*3+kw)*C + c] = xp[n, c, 2*di+pd, 2*ho+kh, 2*wo+kw]
    taps = [xp[:, :, :, kh:kh + 2 * Ho:2, kw:kw + 2 * Wo:2]
            for kh in range(3) for kw in range(3)]       # each (N, C, Dp, Ho, Wo)
    t = jnp.stack(taps, axis=-1)                         # (N, C, Dp, Ho, Wo, 9)
    t = t.reshape(N, C, Do + 1, 2, Ho, Wo, 9)            # depth -> (di, pd)
    t = jnp.transpose(t, (0, 2, 3, 4, 5, 6, 1))          # (N, di, pd, Ho, Wo, 9, C)
    xflat = t.reshape(N, Do + 1, 2, Ho * Wo, 9 * C)

    Coutp = _round_up(C, 128)
    Mtot = Ho * Wo
    K9 = 9 * C
    TM, Mpad, vmem_limit = _choose_tiling(Ho, Wo, C, Coutp)
    if Mpad > Mtot:
        xflat = jnp.pad(xflat, ((0, 0), (0, 0), (0, 0), (0, Mpad - Mtot), (0, 0)))
    n_mt = Mpad // TM

    # --- weight: (Cout, Cin, kd, kh, kw) -> (kd, (kh, kw, cin), Coutp), bf16.
    # (Static across calls in practice; hoist this block out of the jitted
    #  path if the weight is a compile-time constant.)
    w = jnp.transpose(weight, (2, 3, 4, 1, 0)).reshape(3, K9, C)
    w = jnp.pad(w, ((0, 0), (0, 0), (0, Coutp - C))).astype(jnp.bfloat16)

    out = pl.pallas_call(
        _downconv_kernel,
        out_shape=jax.ShapeDtypeStruct((N, Do, Mpad, Coutp), out_dtype),
        grid_spec=pltpu.PrefetchScalarGridSpec(
            num_scalar_prefetch=0,
            grid=(N, Do, n_mt),
            in_specs=[
                # taps for kd = 0, 1 (parity-depth index do, both parities)
                pl.BlockSpec((None, None, 2, TM, K9),
                             lambda n, d, m: (n, d, 0, m, 0)),
                # taps for kd = 2 (parity-depth index do + 1, parity 0 only)
                pl.BlockSpec((None, None, None, TM, K9),
                             lambda n, d, m: (n, d + 1, 0, m, 0)),
                # weights: constant index_map -> resident across the grid
                pl.BlockSpec((3, K9, Coutp), lambda n, d, m: (0, 0, 0)),
            ],
            out_specs=pl.BlockSpec((None, None, TM, Coutp),
                                   lambda n, d, m: (n, d, m, 0)),
        ),
        compiler_params=pltpu.CompilerParams(
            dimension_semantics=("parallel", "parallel", "parallel"),
            vmem_limit_bytes=vmem_limit,
        ),
    )(xflat, xflat, w)

    # drop the spatial-row / Cout padding -> (N, Do, Ho, Wo, C) channels-last
    out = out[:, :, :Mtot, :C].reshape(N, Do, Ho, Wo, C)
    if channels_last:
        return out
    return jnp.transpose(out, (0, 4, 1, 2, 3))            # NCDHW (PyTorch layout)

# TODO(synk): down_type='maxpool' branch (nn.MaxPool3d) not implemented; the
# default constructor path (down_type='conv') is what is reproduced here.


# ---------------------------------------------------------------------------
# Demo / self-check
# ---------------------------------------------------------------------------
if __name__ == "__main__":
    key = jax.random.PRNGKey(0)
    kx, kw = jax.random.split(key)

    N, C, D, H, W = 2, 4, 16, 16, 16
    x = jax.random.normal(kx, (N, C, D, H, W), dtype=jnp.float32)
    fan_in = C * 3 * 3 * 3
    weight = jax.random.normal(kw, (C, C, 3, 3, 3), dtype=jnp.float32) / jnp.sqrt(fan_in)

    # --- p_mode='same' (zero pad 1)
    y = jax.block_until_ready(unet_downsample_conv(x, weight, p_mode="same"))
    assert y.shape == (N, C, 8, 8, 8), y.shape
    y_ref = lax.conv_general_dilated(
        x.astype(jnp.bfloat16), weight.astype(jnp.bfloat16),
        window_strides=(2, 2, 2), padding=((1, 1), (1, 1), (1, 1)),
        dimension_numbers=("NCDHW", "OIDHW", "NCDHW"),
        preferred_element_type=jnp.float32)
    err = float(jnp.max(jnp.abs(y.astype(jnp.float32) - y_ref)))
    assert err < 6e-2, err      # bf16 in/out, f32 accumulation

    # --- p_mode='sym' (replicate pad 1, then valid conv)
    y_sym = jax.block_until_ready(unet_downsample_conv(x, weight, p_mode="sym"))
    assert y_sym.shape == (N, C, 8, 8, 8), y_sym.shape
    xe = jnp.pad(x, ((0, 0), (0, 0), (1, 1), (1, 1), (1, 1)), mode="edge")
    y_sym_ref = lax.conv_general_dilated(
        xe.astype(jnp.bfloat16), weight.astype(jnp.bfloat16),
        window_strides=(2, 2, 2), padding="VALID",
        dimension_numbers=("NCDHW", "OIDHW", "NCDHW"),
        preferred_element_type=jnp.float32)
    err_sym = float(jnp.max(jnp.abs(y_sym.astype(jnp.float32) - y_sym_ref)))
    assert err_sym < 6e-2, err_sym

    # --- channels_last variant (fused-epilogue layout)
    y_cl = jax.block_until_ready(
        unet_downsample_conv(x, weight, p_mode="same", channels_last=True))
    assert y_cl.shape == (N, 8, 8, 8, C), y_cl.shape

    print("KERNEL_OK")
</pallas_src>

<mosaic_0001>
module attributes {stable_mosaic.version = 11 : i64} {
  func.func @_downconv_kernel(%arg0: i32, %arg1: i32, %arg2: i32, %arg3: memref<1x1x2x64x36xbf16, #tpu.memory_space<vmem>>, %arg4: memref<1x1x1x64x36xbf16, #tpu.memory_space<vmem>>, %arg5: memref<3x36x128xbf16, #tpu.memory_space<vmem>>, %arg6: memref<1x1x64x128xbf16, #tpu.memory_space<vmem>>) attributes {dimension_semantics = [#tpu.dimension_semantics<parallel>, #tpu.dimension_semantics<parallel>, #tpu.dimension_semantics<parallel>], iteration_bounds = array<i64: 2, 8, 1>, scalar_prefetch = 0 : i64, scratch_operands = 0 : i64, tpu.core_type = #tpu.core_type<tc>, window_params = [{transform_indices = @transform_0, window_bounds = array<i64: 1, 1, 2, 64, 36>}, {transform_indices = @transform_1, window_bounds = array<i64: 1, 1, 1, 64, 36>}, {pipeline_mode = #tpu.pipeline_mode<synchronous>, transform_indices = @transform_2, window_bounds = array<i64: 3, 36, 128>}, {transform_indices = @transform_3, window_bounds = array<i64: 1, 1, 64, 128>}]} {
    %c0 = arith.constant 0 : index
    %c0_0 = arith.constant 0 : index
    %c0_1 = arith.constant 0 : index
    %c0_2 = arith.constant 0 : index
    %c0_3 = arith.constant 0 : index
    %0 = vector.load %arg3[%c0, %c0_0, %c0_1, %c0_2, %c0_3] : memref<1x1x2x64x36xbf16, #tpu.memory_space<vmem>>, vector<1x1x1x64x36xbf16>
    %1 = vector.shape_cast %0 : vector<1x1x1x64x36xbf16> to vector<64x36xbf16>
    %c0_4 = arith.constant 0 : index
    %c0_5 = arith.constant 0 : index
    %c0_6 = arith.constant 0 : index
    %2 = vector.load %arg5[%c0_4, %c0_5, %c0_6] : memref<3x36x128xbf16, #tpu.memory_space<vmem>>, vector<1x36x128xbf16>
    %3 = vector.shape_cast %2 : vector<1x36x128xbf16> to vector<36x128xbf16>
    %cst = arith.constant dense<0.000000e+00> : vector<64x128xf32>
    %4 = tpu.matmul %1, %3, %cst {dimension_numbers = #tpu.dot_dimension_numbers<[1], [0], [0], [1], [0, 0, 1, 1], [], []>} : vector<64x36xbf16>, vector<36x128xbf16>, vector<64x128xf32> -> vector<64x128xf32>
    %c0_7 = arith.constant 0 : index
    %c0_8 = arith.constant 0 : index
    %c1 = arith.constant 1 : index
    %c0_9 = arith.constant 0 : index
    %c0_10 = arith.constant 0 : index
    %5 = vector.load %arg3[%c0_7, %c0_8, %c1, %c0_9, %c0_10] : memref<1x1x2x64x36xbf16, #tpu.memory_space<vmem>>, vector<1x1x1x64x36xbf16>
    %6 = vector.shape_cast %5 : vector<1x1x1x64x36xbf16> to vector<64x36xbf16>
    %c1_11 = arith.constant 1 : index
    %c0_12 = arith.constant 0 : index
    %c0_13 = arith.constant 0 : index
    %7 = vector.load %arg5[%c1_11, %c0_12, %c0_13] : memref<3x36x128xbf16, #tpu.memory_space<vmem>>, vector<1x36x128xbf16>
    %8 = vector.shape_cast %7 : vector<1x36x128xbf16> to vector<36x128xbf16>
    %cst_14 = arith.constant dense<0.000000e+00> : vector<64x128xf32>
    %9 = tpu.matmul %6, %8, %cst_14 {dimension_numbers = #tpu.dot_dimension_numbers<[1], [0], [0], [1], [0, 0, 1, 1], [], []>} : vector<64x36xbf16>, vector<36x128xbf16>, vector<64x128xf32> -> vector<64x128xf32>
    %10 = arith.addf %4, %9 : vector<64x128xf32>
    %c0_15 = arith.constant 0 : index
    %c0_16 = arith.constant 0 : index
    %c0_17 = arith.constant 0 : index
    %c0_18 = arith.constant 0 : index
    %c0_19 = arith.constant 0 : index
    %11 = vector.load %arg4[%c0_15, %c0_16, %c0_17, %c0_18, %c0_19] : memref<1x1x1x64x36xbf16, #tpu.memory_space<vmem>>, vector<1x1x1x64x36xbf16>
    %12 = vector.shape_cast %11 : vector<1x1x1x64x36xbf16> to vector<64x36xbf16>
    %c2 = arith.constant 2 : index
    %c0_20 = arith.constant 0 : index
    %c0_21 = arith.constant 0 : index
    %13 = vector.load %arg5[%c2, %c0_20, %c0_21] : memref<3x36x128xbf16, #tpu.memory_space<vmem>>, vector<1x36x128xbf16>
    %14 = vector.shape_cast %13 : vector<1x36x128xbf16> to vector<36x128xbf16>
    %cst_22 = arith.constant dense<0.000000e+00> : vector<64x128xf32>
    %15 = tpu.matmul %12, %14, %cst_22 {dimension_numbers = #tpu.dot_dimension_numbers<[1], [0], [0], [1], [0, 0, 1, 1], [], []>} : vector<64x36xbf16>, vector<36x128xbf16>, vector<64x128xf32> -> vector<64x128xf32>
    %16 = arith.addf %10, %15 : vector<64x128xf32>
    %17 = arith.truncf %16 : vector<64x128xf32> to vector<64x128xbf16>
    %c0_23 = arith.constant 0 : index
    %c0_24 = arith.constant 0 : index
    %c0_25 = arith.constant 0 : index
    %c0_26 = arith.constant 0 : index
    %18 = vector.load %arg6[%c0_23, %c0_24, %c0_25, %c0_26] : memref<1x1x64x128xbf16, #tpu.memory_space<vmem>>, vector<1x1x64x128xbf16>
    %19 = vector.shape_cast %18 : vector<1x1x64x128xbf16> to vector<64x128xbf16>
    %20 = vector.shape_cast %17 : vector<64x128xbf16> to vector<1x1x64x128xbf16>
    tpu.vector_store %arg6[%c0_23, %c0_24, %c0_25, %c0_26], %20 {strides = array<i32>} : memref<1x1x64x128xbf16, #tpu.memory_space<vmem>>, vector<1x1x64x128xbf16>,
    return
  }
  func.func @transform_0(%arg0: i32, %arg1: i32, %arg2: i32) -> (i32, i32, i32, i32, i32) {
    %c0_i32 = arith.constant 0 : i32
    %c0_i32_0 = arith.constant 0 : i32
    %c0_i32_1 = arith.constant 0 : i32
    return %arg0, %arg1, %c0_i32, %arg2, %c0_i32_0 : i32, i32, i32, i32, i32
  }
  func.func @transform_1(%arg0: i32, %arg1: i32, %arg2: i32) -> (i32, i32, i32, i32, i32) {
    %c1_i32 = arith.constant 1 : i32
    %0 = arith.addi %arg1, %c1_i32 : i32
    %c0_i32 = arith.constant 0 : i32
    %c0_i32_0 = arith.constant 0 : i32
    %c0_i32_1 = arith.constant 0 : i32
    return %arg0, %0, %c0_i32, %arg2, %c0_i32_0 : i32, i32, i32, i32, i32
  }
  func.func @transform_2(%arg0: i32, %arg1: i32, %arg2: i32) -> (i32, i32, i32) {
    %c0_i32 = arith.constant 0 : i32
    %c0_i32_0 = arith.constant 0 : i32
    %c0_i32_1 = arith.constant 0 : i32
    %c0_i32_2 = arith.constant 0 : i32
    return %c0_i32, %c0_i32_0, %c0_i32_1 : i32, i32, i32
  }
  func.func @transform_3(%arg0: i32, %arg1: i32, %arg2: i32) -> (i32, i32, i32, i32) {
    %c0_i32 = arith.constant 0 : i32
    %c0_i32_0 = arith.constant 0 : i32
    return %arg0, %arg1, %arg2, %c0_i32 : i32, i32, i32, i32
  }
}

</mosaic_0001>

<llo_original>
// kernel: unet_downsample_conv.1
$region0: #{unet_downsample_conv.1}
  #allocation0 [shape = 'u32[]', space=smem, size = 0x4, offset = 0x4, fixed_abs, tag = 'smem constant byte address 0x4 - core index']
  #allocation1 [shape = 'u32[72,128]{1,0:T(1,128)}', space=vmem, size = 0x9000, scoped, tag = 'internal scratch']
  %s0 = inlined_call_operand.vmem [shape: bf16[2,9,2,64,36], index: 0, kind: input, shape index: {}, may-alias: {0,1}]
  %s1 = inlined_call_operand.vmem [shape: bf16[2,9,2,64,36], index: 1, kind: input, shape index: {}, may-alias: {0,1}]
  %s2 = inlined_call_operand.vmem [shape: bf16[3,36,128], index: 2, kind: input, shape index: {}]
  %s3 = inlined_call_operand.vmem [shape: bf16[2,8,64,128], index: 3, kind: output, shape index: {}]
  %s4 = sld [smem:[#allocation0]]
  $region45: #{unet_downsample_conv.1} parent=0
    _
  %s6 = ssub.s32 1, %s4
  %s7 = scalar_select 0, %s6, %s4
  loop: start=0, step=1, limit=18
  $region2: #{unet_downsample_conv.1} parent=0 // loop_pre_header
    _
  $region3: #{unet_downsample_conv.1} parent=0 // loop_header
    %s9 = sphi 0, %s13
    %p10 = scmp.ge.s32.totalorder %s9, 18
    %s16 = sphi 0, %s35
    %s17 = sphi 0, %s31
    %s18 = sphi 0, %s27
    %s19 = sphi 0, %s16
    %s20 = sphi 0, %s17
    %s21 = sphi 0, %s18
    %s22 = sphi 0, %s19
    %s23 = sphi 0, %s20
    %s24 = sphi 0, %s21
    %s42 = sphi 0, %s44
    %s45 = sphi 0, %s42
    %s46 = sphi 0, %s45
    %s62 = sphi 0, %s46
    %s74 = sphi 0, %s76
    %s77 = sphi 0, %s74
    %s78 = sphi 0, %s77
    %s94 = sphi 0, %s78
    %s98 = sphi 0, %s98
    %s100 = sphi 0, %s98
    %s101 = sphi 0, %s100
    %s115 = sphi 0, %s101
    %s125 = sphi 0, %s127
    %s128 = sphi 0, %s125
    %s129 = sphi 0, %s128
    %s145 = sphi 0, %s129
  $region4: #{unet_downsample_conv.1} parent=0 // loop_header_branch
    %12 = sbr.rel (%p10) target = $region8
  $region5: #{unet_downsample_conv.1} parent=0 // loop_body
    %s14 = ssub.s32 %s9, 1
    %s15 = ssub.s32 %s9, 2
    %s25 = sadd.s32 1, %s18
    %p26 = scmp.ge.s32.totalorder %s25, 1
    %s27 = scalar_select %p26, 0, %s25
    %s28 = sadd.s32 1, %s17
    %s29 = scalar_select %p26, %s28, %s17
    %p30 = scmp.ge.s32.totalorder %s29, 8
    %s31 = scalar_select %p30, 0, %s29
    %s32 = sadd.s32 1, %s16
    %s33 = scalar_select %p30, %s32, %s16
    %p34 = scmp.ge.s32.totalorder %s33, 2
    %s35 = scalar_select %p34, 0, %s33
    %s36 = ssub.s32 %s16, %s35
    %s37 = ssub.s32 %s17, %s31
    %s38 = sor.u32 %s36, %s37
    %s39 = ssub.s32 %s18, %s27
    %s40 = sor.u32 %s38, %s39
    %p41 = scmp.eq.s32.totalorder %s40, 0
    %s43 = sadd.s32 %s42, 1
    %s44 = scalar_select %p41, %s42, %s43
    %p47 = pneg %p41
    %p48 = scmp.eq.s32.totalorder %s9, 15
    %p49 = por %p47, %p48
    %p50 = scmp.ne.s32.totalorder %s42, %s45
    %p51 = scmp.eq.s32.totalorder %s9, 0
    %p52 = por %p50, %p51
    %p53 = scmp.ne.s32.totalorder %s42, %s45
    %p54 = scmp.eq.s32.totalorder %s14, 15
    %p55 = por %p53, %p54
    %p56 = scmp.ne.s32.totalorder %s45, %s46
    %p57 = scmp.eq.s32.totalorder %s14, 0
    %p58 = por %p56, %p57
    %p59 = scmp.ne.s32.totalorder %s45, %s46
    %p60 = scmp.eq.s32.totalorder %s15, 15
    %p61 = por %p59, %p60
    %p63 = scmp.ne.s32.totalorder %s46, %s62
    %p64 = scmp.eq.s32.totalorder %s15, 0
    %p65 = por %p63, %p64
    %s66 = sadd.s32 %s17, 1
    %s67 = sadd.s32 %s31, 1
    %s68 = ssub.s32 %s16, %s35
    %s69 = ssub.s32 %s66, %s67
    %s70 = sor.u32 %s68, %s69
    %s71 = ssub.s32 %s18, %s27
    %s72 = sor.u32 %s70, %s71
    %p73 = scmp.eq.s32.totalorder %s72, 0
    %s75 = sadd.s32 %s74, 1
    %s76 = scalar_select %p73, %s74, %s75
    %p79 = pneg %p73
    %p80 = scmp.eq.s32.totalorder %s9, 15
    %p81 = por %p79, %p80
    %p82 = scmp.ne.s32.totalorder %s74, %s77
    %p83 = scmp.eq.s32.totalorder %s9, 0
    %p84 = por %p82, %p83
    %p85 = scmp.ne.s32.totalorder %s74, %s77
    %p86 = scmp.eq.s32.totalorder %s14, 15
    %p87 = por %p85, %p86
    %p88 = scmp.ne.s32.totalorder %s77, %s78
    %p89 = scmp.eq.s32.totalorder %s14, 0
    %p90 = por %p88, %p89
    %p91 = scmp.ne.s32.totalorder %s77, %s78
    %p92 = scmp.eq.s32.totalorder %s15, 15
    %p93 = por %p91, %p92
    %p95 = scmp.ne.s32.totalorder %s78, %s94
    %p96 = scmp.eq.s32.totalorder %s15, 0
    %p97 = por %p95, %p96
    %s99 = sadd.s32 %s98, 1
    %p102 = scmp.eq.s32.totalorder %s9, 15
    %p103 = scmp.ne.s32.totalorder %s98, %s100
    %p104 = scmp.eq.s32.totalorder %s9, 0
    %p105 = por %p103, %p104
    %p106 = scmp.ne.s32.totalorder %s98, %s100
    %p107 = scmp.eq.s32.totalorder %s14, 15
    %p108 = por %p106, %p107
    %p109 = scmp.ne.s32.totalorder %s100, %s101
    %p110 = scmp.eq.s32.totalorder %s14, 0
    %p111 = por %p109, %p110
    %p112 = scmp.ne.s32.totalorder %s100, %s101
    %p113 = scmp.eq.s32.totalorder %s15, 15
    %p114 = por %p112, %p113
    %p116 = scmp.ne.s32.totalorder %s101, %s115
    %p117 = scmp.eq.s32.totalorder %s15, 0
    %p118 = por %p116, %p117
    %s119 = ssub.s32 %s16, %s35
    %s120 = ssub.s32 %s17, %s31
    %s121 = sor.u32 %s119, %s120
    %s122 = ssub.s32 %s18, %s27
    %s123 = sor.u32 %s121, %s122
    %p124 = scmp.eq.s32.totalorder %s123, 0
    %s126 = sadd.s32 %s125, 1
    %s127 = scalar_select %p124, %s125, %s126
    %p130 = pneg %p124
    %p131 = scmp.eq.s32.totalorder %s9, 15
    %p132 = por %p130, %p131
    %p133 = scmp.ne.s32.totalorder %s125, %s128
    %p134 = scmp.eq.s32.totalorder %s9, 0
    %p135 = por %p133, %p134
    %p136 = scmp.ne.s32.totalorder %s125, %s128
    %p137 = scmp.eq.s32.totalorder %s14, 15
    %p138 = por %p136, %p137
    %p139 = scmp.ne.s32.totalorder %s128, %s129
    %p140 = scmp.eq.s32.totalorder %s14, 0
    %p141 = por %p139, %p140
    %p142 = scmp.ne.s32.totalorder %s128, %s129
    %p143 = scmp.eq.s32.totalorder %s15, 15
    %p144 = por %p142, %p143
    %p146 = scmp.ne.s32.totalorder %s129, %s145
    %p147 = scmp.eq.s32.totalorder %s15, 0
    %p148 = por %p146, %p147
    %p149 = scmp.le.s32.totalorder 1, %s9
    %p150 = scmp.lt.s32.totalorder %s9, 17
    %p151 = pnand %p149, %p150
    %p152 = pneg %p151
    // Predicated region
    $region9: #{unet_downsample_conv.1} parent=5 // pred_check
      _
    $region10: #{unet_downsample_conv.1} parent=5 // pred_check_branch
      %154 = sbr.rel (%p151) target = $region12
    $region11: #{unet_downsample_conv.1} parent=5 // pred_region
      %s155 = ssub.s32 %s9, 1
      // Predicated region
      $region13: #{unet_downsample_conv.1} parent=11 // pred_check
        %p156 = pneg %p111
      $region14: #{unet_downsample_conv.1} parent=11 // pred_check_branch
        %158 = sbr.rel (%p156) target = $region16
      $region15: #{unet_downsample_conv.1} parent=11 // pred_region
        _
      $region16: #{unet_downsample_conv.1} parent=11 // pred_fallthru
        _
    $region12: #{unet_downsample_conv.1} parent=5 // pred_fallthru
      _
    %p159 = scmp.lt.s32.totalorder %s9, 16
    // Predicated region
    $region17: #{unet_downsample_conv.1} parent=5 // pred_check
      %p160 = pneg %p159
    $region18: #{unet_downsample_conv.1} parent=5 // pred_check_branch
      %162 = sbr.rel (%p160) target = $region20
    $region19: #{unet_downsample_conv.1} parent=5 // pred_region
      // Predicated region
      $region21: #{unet_downsample_conv.1} parent=19 // pred_check
        %p163 = pneg %p52
      $region22: #{unet_downsample_conv.1} parent=19 // pred_check_branch
        %165 = sbr.rel (%p163) target = $region24
      $region23: #{unet_downsample_conv.1} parent=19 // pred_region
        %s166 = smul.u32 8, %s18
        %p167 = scmp.lt.s32.totalorder %s16, 1
        %s168 = scalar_select %p167, %s16, 1
        %p169 = scmp.lt.s32.totalorder %s17, 8
        %s170 = scalar_select %p169, %s17, 8
        %p171 = scmp.lt.s32.totalorder %s166, 7
        %s172 = scalar_select %p171, %s166, 7
        %s173 = smul.addr %s170, 16
        %s174 = sadd.s32 %s172, %s173
        %s175 = smul.addr %s168, 144
        %s176 = sadd.s32 %s174, %s175
        %s177 = smul.addr %s176, 4
        %s178 = scalar_lea.vmem %s0, %s177
        %s179 = smul.u32 8, %s18
      $region24: #{unet_downsample_conv.1} parent=19 // pred_fallthru
        _
      // Predicated region
      $region25: #{unet_downsample_conv.1} parent=19 // pred_check
        %p180 = pneg %p84
      $region26: #{unet_downsample_conv.1} parent=19 // pred_check_branch
        %182 = sbr.rel (%p180) target = $region28
      $region27: #{unet_downsample_conv.1} parent=19 // pred_region
        %s183 = sadd.s32 %s17, 1
        %s184 = smul.u32 8, %s18
        %p185 = scmp.lt.s32.totalorder %s16, 1
        %s186 = scalar_select %p185, %s16, 1
        %p187 = scmp.lt.s32.totalorder %s183, 8
        %s188 = scalar_select %p187, %s183, 8
        %p189 = scmp.lt.s32.totalorder %s184, 7
        %s190 = scalar_select %p189, %s184, 7
        %s191 = smul.addr %s188, 16
        %s192 = sadd.s32 %s190, %s191
        %s193 = smul.addr %s186, 144
        %s194 = sadd.s32 %s192, %s193
        %s195 = smul.addr %s194, 4
        %s196 = scalar_lea.vmem %s1, %s195
        %s197 = sadd.s32 %s17, 1
        %s198 = smul.u32 8, %s18
      $region28: #{unet_downsample_conv.1} parent=19 // pred_fallthru
        _
    $region20: #{unet_downsample_conv.1} parent=5 // pred_fallthru
      _
    %p199 = scmp.le.s32.totalorder 1, %s9
    %p200 = scmp.lt.s32.totalorder %s9, 17
    %p201 = pnand %p199, %p200
    %p202 = pneg %p201
    // Predicated region
    $region29: #{unet_downsample_conv.1} parent=5 // pred_check
      _
    $region30: #{unet_downsample_conv.1} parent=5 // pred_check_branch
      %204 = sbr.rel (%p201) target = $region32
    $region31: #{unet_downsample_conv.1} parent=5 // pred_region
      %s205 = ssub.s32 %s9, 1
      %s206 = smul.u32 8, %s21
      %p207 = scmp.lt.s32.totalorder %s19, 1
      %s208 = scalar_select %p207, %s19, 1
      %p209 = scmp.lt.s32.totalorder %s20, 8
      %s210 = scalar_select %p209, %s20, 8
      %p211 = scmp.lt.s32.totalorder %s206, 7
      %s212 = scalar_select %p211, %s206, 7
      %s213 = smul.addr %s210, 16
      %s214 = sadd.s32 %s212, %s213
      %s215 = smul.addr %s208, 144
      %s216 = sadd.s32 %s214, %s215
      %s217 = smul.addr %s216, 4
      %s218 = scalar_lea.vmem %s0, %s217
      %p219 = pneg %p58
      %p220 = pneg %p55
      %s221 = sadd.s32 %s20, 1
      %s222 = smul.u32 8, %s21
      %p223 = scmp.lt.s32.totalorder %s19, 1
      %s224 = scalar_select %p223, %s19, 1
      %p225 = scmp.lt.s32.totalorder %s221, 8
      %s226 = scalar_select %p225, %s221, 8
      %p227 = scmp.lt.s32.totalorder %s222, 7
      %s228 = scalar_select %p227, %s222, 7
      %s229 = smul.addr %s226, 16
      %s230 = sadd.s32 %s228, %s229
      %s231 = smul.addr %s224, 144
      %s232 = sadd.s32 %s230, %s231
      %s233 = smul.addr %s232, 4
      %s234 = scalar_lea.vmem %s1, %s233
      %p235 = pneg %p90
      %p236 = pneg %p87
      %p237 = pneg %p111
      %p238 = pneg %p108
      %p239 = pneg %p141
      %p240 = pneg %p138
      %s241 = smul.u32 8, %s21
      %p242 = scmp.lt.s32.totalorder %s19, 1
      %s243 = scalar_select %p242, %s19, 1
      %p244 = scmp.lt.s32.totalorder %s20, 7
      %s245 = scalar_select %p244, %s20, 7
      %p246 = scmp.lt.s32.totalorder %s241, 7
      %s247 = scalar_select %p246, %s241, 7
      %s248 = smul.addr %s245, 8
      %s249 = sadd.s32 %s247, %s248
      %s250 = smul.addr %s243, 64
      %s251 = sadd.s32 %s249, %s250
      %s252 = smul.addr %s251, 4
      %s253 = scalar_lea.vmem %s3, %s252
      %s254 = smul.u32 8, %s21
      %p255 = scmp.lt.s32.totalorder %s19, 1
      %s256 = scalar_select %p255, %s19, 1
      %p257 = scmp.lt.s32.totalorder %s20, 8
      %s258 = scalar_select %p257, %s20, 8
      %p259 = scmp.lt.s32.totalorder %s254, 7
      %s260 = scalar_select %p259, %s254, 7
      %s261 = smul.addr %s258, 16
      %s262 = sadd.s32 %s260, %s261
      %s263 = smul.addr %s256, 144
      %s264 = sadd.s32 %s262, %s263
      %s265 = smul.addr %s264, 4
      %s266 = scalar_lea.vmem %s0, %s265
      %s267 = smul.u32 8, %s21
      %s268 = sadd.s32 %s20, 1
      %s269 = smul.u32 8, %s21
      %p270 = scmp.lt.s32.totalorder %s19, 1
      %s271 = scalar_select %p270, %s19, 1
      %p272 = scmp.lt.s32.totalorder %s268, 8
      %s273 = scalar_select %p272, %s268, 8
      %p274 = scmp.lt.s32.totalorder %s269, 7
      %s275 = scalar_select %p274, %s269, 7
      %s276 = smul.addr %s273, 16
      %s277 = sadd.s32 %s275, %s276
      %s278 = smul.addr %s271, 144
      %s279 = sadd.s32 %s277, %s278
      %s280 = smul.addr %s279, 4
      %s281 = scalar_lea.vmem %s1, %s280
      %s282 = sadd.s32 %s20, 1
      %s283 = smul.u32 8, %s21
      %s284 = smul.u32 8, %s21
      %p285 = scmp.lt.s32.totalorder %s19, 1
      %s286 = scalar_select %p285, %s19, 1
      %p287 = scmp.lt.s32.totalorder %s20, 7
      %s288 = scalar_select %p287, %s20, 7
      %p289 = scmp.lt.s32.totalorder %s284, 7
      %s290 = scalar_select %p289, %s284, 7
      %s291 = smul.addr %s288, 8
      %s292 = sadd.s32 %s290, %s291
      %s293 = smul.addr %s286, 64
      %s294 = sadd.s32 %s292, %s293
      %s295 = smul.addr %s294, 4
      %s296 = scalar_lea.vmem %s3, %s295
      %s297 = smul.u32 8, %s21
      %v299 = vld [vmem:[%s266] sm:$0xf]
      %v300 = vld [vmem:[%s266 + $0x4] sm:$0xf]
      %v301 = vld [vmem:[%s266 + $0x8] sm:$0xf]
      %v302 = vld [vmem:[%s266 + $0xc] sm:$0xf]
      %v303 = vld [vmem:[%s266 + $0x10] sm:$0xf]
      %v304 = vld [vmem:[%s266 + $0x14] sm:$0xf]
      %v305 = vld [vmem:[%s266 + $0x18] sm:$0xf]
      %v306 = vld [vmem:[%s266 + $0x1c] sm:$0xf]
      %v307 = vld [vmem:[%s2] sm:$0xf]
      %v308 = vld [vmem:[%s2 + $0x4] sm:$0xf]
      %v309 = vld [vmem:[%s2 + $0x8] sm:$0xf]
      %v310 = vld [vmem:[%s2 + $0xc] sm:$0xf]
      %v311 = vld [vmem:[%s2 + $0x10] sm:$0x3]
      %s312 = scalar_lea.vmem %s266, 32
      %v313 = vld [vmem:[%s312] sm:$0xf]
      %v314 = vld [vmem:[%s312 + $0x4] sm:$0xf]
      %v315 = vld [vmem:[%s312 + $0x8] sm:$0xf]
      %v316 = vld [vmem:[%s312 + $0xc] sm:$0xf]
      %v317 = vld [vmem:[%s312 + $0x10] sm:$0xf]
      %v318 = vld [vmem:[%s312 + $0x14] sm:$0xf]
      %v319 = vld [vmem:[%s312 + $0x18] sm:$0xf]
      %v320 = vld [vmem:[%s312 + $0x1c] sm:$0xf]
      %s321 = scalar_lea.vmem %s2, 20
      %v322 = vld [vmem:[%s321] sm:$0xf]
      %v323 = vld [vmem:[%s321 + $0x4] sm:$0xf]
      %v324 = vld [vmem:[%s321 + $0x8] sm:$0xf]
      %v325 = vld [vmem:[%s321 + $0xc] sm:$0xf]
      %v326 = vld [vmem:[%s321 + $0x10] sm:$0x3]
      %v335 = vunpack.c.l.b16 %v313
      %v336 = vunpack.c.l.b16 %v314
      %v337 = vunpack.c.l.b16 %v315
      %v338 = vunpack.c.l.b16 %v316
      %v339 = vunpack.c.l.b16 %v317
      %v340 = vunpack.c.l.b16 %v318
      %v341 = vunpack.c.l.b16 %v319
      %v342 = vunpack.c.l.b16 %v320
      %v343 = vpack.c.b16 %v336, %v335
      %v344 = vpack.c.b16 %v338, %v337
      %v345 = vpack.c.b16 %v340, %v339
      %v346 = vpack.c.b16 %v342, %v341
      %v352 = vunpack.c.l.b16 %v322
      %v353 = vunpack.c.l.b16 %v323
      %v354 = vunpack.c.l.b16 %v324
      %v355 = vunpack.c.l.b16 %v325
      %v356 = vunpack.c.l.b16 %v326
      %v357 = vpack.c.b16 %v353, %v352
      %v358 = vpack.c.b16 %v355, %v354
      %v359 = vpack.c.b16 %v356, %v356
      %vm362 = vcmask 293888
      %v364 = vsel %vm362, %v343, 0
      %v367 = vsel %vm362, %v344, 0
      %v370 = vsel %vm362, %v345, 0
      %v373 = vsel %vm362, %v346, 0
      %vm375 = vcmask 1041408
      %v377 = vsel %vm375, %v359, 0
      %379 = vmatpush.bf16.msra.mxu0 0
      %380 = vmatpush.bf16.msra.mxu0 0
      %381 = vmatpush.bf16.msra.mxu0 0
      %382 = vmatpush.bf16.msra.mxu0 0
      %383 = vmatpush.bf16.msra.mxu0 0
      %384 = vmatpush.bf16.msra.mxu0 %v377
      %385 = vmatpush.bf16.msra.mxu0 %v358
      %386 = vmatpush.bf16.msra.mxu0 %v357
      %387 = vmatmul.bf16.gmra.mxu0 %v364
      %v388 = vpop.f32.mrf.mxu0
      %v389 = vadd.f32 0.0, %v388
      %v390 = vpop.f32.mrf.mxu0
      %v391 = vadd.f32 0.0, %v390
      %392 = vmatmul.bf16.gmra.mxu0 %v367
      %v393 = vpop.f32.mrf.mxu0
      %v394 = vadd.f32 0.0, %v393
      %v395 = vpop.f32.mrf.mxu0
      %v396 = vadd.f32 0.0, %v395
      %397 = vmatmul.bf16.gmra.mxu0 %v370
      %v398 = vpop.f32.mrf.mxu0
      %v399 = vadd.f32 0.0, %v398
      %v400 = vpop.f32.mrf.mxu0
      %v401 = vadd.f32 0.0, %v400
      %402 = vmatmul.bf16.gmra.mxu0 %v373
      %v403 = vpop.f32.mrf.mxu0
      %v404 = vadd.f32 0.0, %v403
      %v405 = vpop.f32.mrf.mxu0
      %v406 = vadd.f32 0.0, %v405
      %407 = vdwg.mxu0
      %v416 = vunpack.c.l.b16 %v299
      %v417 = vunpack.c.l.b16 %v300
      %v418 = vunpack.c.l.b16 %v301
      %v419 = vunpack.c.l.b16 %v302
      %v420 = vunpack.c.l.b16 %v303
      %v421 = vunpack.c.l.b16 %v304
      %v422 = vunpack.c.l.b16 %v305
      %v423 = vunpack.c.l.b16 %v306
      %v424 = vpack.c.b16 %v417, %v416
      %v425 = vpack.c.b16 %v419, %v418
      %v426 = vpack.c.b16 %v421, %v420
      %v427 = vpack.c.b16 %v423, %v422
      %v433 = vunpack.c.l.b16 %v307
      %v434 = vunpack.c.l.b16 %v308
      %v435 = vunpack.c.l.b16 %v309
      %v436 = vunpack.c.l.b16 %v310
      %v437 = vunpack.c.l.b16 %v311
      %v438 = vpack.c.b16 %v434, %v433
      %v439 = vpack.c.b16 %v436, %v435
      %v440 = vpack.c.b16 %v437, %v437
      %v444 = vsel %vm362, %v424, 0
      %v447 = vsel %vm362, %v425, 0
      %v450 = vsel %vm362, %v426, 0
      %v453 = vsel %vm362, %v427, 0
      %v456 = vsel %vm375, %v440, 0
      %458 = vmatpush.bf16.msra.mxu0 0
      %459 = vmatpush.bf16.msra.mxu0 0
      %460 = vmatpush.bf16.msra.mxu0 0
      %461 = vmatpush.bf16.msra.mxu0 0
      %462 = vmatpush.bf16.msra.mxu0 0
      %463 = vmatpush.bf16.msra.mxu0 %v456
      %464 = vmatpush.bf16.msra.mxu0 %v439
      %465 = vmatpush.bf16.msra.mxu0 %v438
      %466 = vmatmul.bf16.gmra.mxu0 %v444
      %v467 = vpop.f32.mrf.mxu0
      %v468 = vadd.f32 %v389, %v467
      %v469 = vpop.f32.mrf.mxu0
      %v470 = vadd.f32 %v391, %v469
      %471 = vmatmul.bf16.gmra.mxu0 %v447
      %v472 = vpop.f32.mrf.mxu0
      %v473 = vadd.f32 %v394, %v472
      %v474 = vpop.f32.mrf.mxu0
      %v475 = vadd.f32 %v396, %v474
      %476 = vmatmul.bf16.gmra.mxu0 %v450
      %v477 = vpop.f32.mrf.mxu0
      %v478 = vadd.f32 %v399, %v477
      %v479 = vpop.f32.mrf.mxu0
      %v480 = vadd.f32 %v401, %v479
      %481 = vmatmul.bf16.gmra.mxu0 %v453
      %v482 = vpop.f32.mrf.mxu0
      %v483 = vadd.f32 %v404, %v482
      %v484 = vpop.f32.mrf.mxu0
      %v485 = vadd.f32 %v406, %v484
      %486 = vdwg.mxu0
      %v487 = vld [vmem:[%s281] sm:$0xf]
      %v488 = vld [vmem:[%s281 + $0x4] sm:$0xf]
      %v489 = vld [vmem:[%s281 + $0x8] sm:$0xf]
      %v490 = vld [vmem:[%s281 + $0xc] sm:$0xf]
      %v491 = vld [vmem:[%s281 + $0x10] sm:$0xf]
      %v492 = vld [vmem:[%s281 + $0x14] sm:$0xf]
      %v493 = vld [vmem:[%s281 + $0x18] sm:$0xf]
      %v494 = vld [vmem:[%s281 + $0x1c] sm:$0xf]
      %s495 = scalar_lea.vmem %s2, 40
      %v496 = vld [vmem:[%s495] sm:$0xf]
      %v497 = vld [vmem:[%s495 + $0x4] sm:$0xf]
      %v498 = vld [vmem:[%s495 + $0x8] sm:$0xf]
      %v499 = vld [vmem:[%s495 + $0xc] sm:$0xf]
      %v500 = vld [vmem:[%s495 + $0x10] sm:$0x3]
      %v509 = vunpack.c.l.b16 %v487
      %v510 = vunpack.c.l.b16 %v488
      %v511 = vunpack.c.l.b16 %v489
      %v512 = vunpack.c.l.b16 %v490
      %v513 = vunpack.c.l.b16 %v491
      %v514 = vunpack.c.l.b16 %v492
      %v515 = vunpack.c.l.b16 %v493
      %v516 = vunpack.c.l.b16 %v494
      %v517 = vpack.c.b16 %v510, %v509
      %v518 = vpack.c.b16 %v512, %v511
      %v519 = vpack.c.b16 %v514, %v513
      %v520 = vpack.c.b16 %v516, %v515
      %v526 = vunpack.c.l.b16 %v496
      %v527 = vunpack.c.l.b16 %v497
      %v528 = vunpack.c.l.b16 %v498
      %v529 = vunpack.c.l.b16 %v499
      %v530 = vunpack.c.l.b16 %v500
      %v531 = vpack.c.b16 %v527, %v526
      %v532 = vpack.c.b16 %v529, %v528
      %v533 = vpack.c.b16 %v530, %v530
      %v537 = vsel %vm362, %v517, 0
      %v540 = vsel %vm362, %v518, 0
      %v543 = vsel %vm362, %v519, 0
      %v546 = vsel %vm362, %v520, 0
      %v549 = vsel %vm375, %v533, 0
      %551 = vmatpush.bf16.msra.mxu0 0
      %552 = vmatpush.bf16.msra.mxu0 0
      %553 = vmatpush.bf16.msra.mxu0 0
      %554 = vmatpush.bf16.msra.mxu0 0
      %555 = vmatpush.bf16.msra.mxu0 0
      %556 = vmatpush.bf16.msra.mxu0 %v549
      %557 = vmatpush.bf16.msra.mxu0 %v532
      %558 = vmatpush.bf16.msra.mxu0 %v531
      %559 = vmatmul.bf16.gmra.mxu0 %v537
      %v560 = vpop.f32.mrf.mxu0
      %v561 = vadd.f32 0.0, %v560
      %v562 = vpop.f32.mrf.mxu0
      %v563 = vadd.f32 0.0, %v562
      %564 = vmatmul.bf16.gmra.mxu0 %v540
      %v565 = vpop.f32.mrf.mxu0
      %v566 = vadd.f32 0.0, %v565
      %v567 = vpop.f32.mrf.mxu0
      %v568 = vadd.f32 0.0, %v567
      %569 = vmatmul.bf16.gmra.mxu0 %v543
      %v570 = vpop.f32.mrf.mxu0
      %v571 = vadd.f32 0.0, %v570
      %v572 = vpop.f32.mrf.mxu0
      %v573 = vadd.f32 0.0, %v572
      %574 = vmatmul.bf16.gmra.mxu0 %v546
      %v575 = vpop.f32.mrf.mxu0
      %v576 = vadd.f32 0.0, %v575
      %v577 = vpop.f32.mrf.mxu0
      %v578 = vadd.f32 0.0, %v577
      %579 = vdwg.mxu0
      %v580 = vadd.f32 %v468, %v561
      %v581 = vadd.f32 %v470, %v563
      %v582 = vadd.f32 %v473, %v566
      %v583 = vadd.f32 %v475, %v568
      %v584 = vadd.f32 %v478, %v571
      %v585 = vadd.f32 %v480, %v573
      %v586 = vadd.f32 %v483, %v576
      %v587 = vadd.f32 %v485, %v578
      %v588 = vpack.c.bf16 %v580, %v580
      %v589 = vpack.c.bf16 %v581, %v581
      %v590 = vpack.c.bf16 %v582, %v582
      %v591 = vpack.c.bf16 %v583, %v583
      %v592 = vpack.c.bf16 %v584, %v584
      %v593 = vpack.c.bf16 %v585, %v585
      %v594 = vpack.c.bf16 %v586, %v586
      %v595 = vpack.c.bf16 %v587, %v587
      %596 = vst [vmem:[%s296] sm:$0xf] %v588
      %597 = vst [vmem:[%s296 + $0x4] sm:$0xf] %v589
      %598 = vst [vmem:[%s296 + $0x8] sm:$0xf] %v590
      %599 = vst [vmem:[%s296 + $0xc] sm:$0xf] %v591
      %600 = vst [vmem:[%s296 + $0x10] sm:$0xf] %v592
      %601 = vst [vmem:[%s296 + $0x14] sm:$0xf] %v593
      %602 = vst [vmem:[%s296 + $0x18] sm:$0xf] %v594
      %603 = vst [vmem:[%s296 + $0x1c] sm:$0xf] %v595
      %s604 = smul.u32 8, %s21
      %p605 = scmp.lt.s32.totalorder %s19, 1
      %s606 = scalar_select %p605, %s19, 1
      %p607 = scmp.lt.s32.totalorder %s20, 7
      %s608 = scalar_select %p607, %s20, 7
      %p609 = scmp.lt.s32.totalorder %s604, 7
      %s610 = scalar_select %p609, %s604, 7
      %s611 = smul.addr %s608, 8
      %s612 = sadd.s32 %s610, %s611
      %s613 = smul.addr %s606, 64
      %s614 = sadd.s32 %s612, %s613
      %s615 = smul.addr %s614, 4
      %s616 = scalar_lea.vmem %s3, %s615
      // Predicated region
      $region33: #{unet_downsample_conv.1} parent=31 // pred_check
        %p617 = pneg %p138
      $region34: #{unet_downsample_conv.1} parent=31 // pred_check_branch
        %619 = sbr.rel (%p617) target = $region36
      $region35: #{unet_downsample_conv.1} parent=31 // pred_region
        %s620 = smul.u32 8, %s21
      $region36: #{unet_downsample_conv.1} parent=31 // pred_fallthru
        _
    $region32: #{unet_downsample_conv.1} parent=5 // pred_fallthru
      _
    %p621 = scmp.le.s32.totalorder 2, %s9
    // Predicated region
    $region37: #{unet_downsample_conv.1} parent=5 // pred_check
      %p622 = pneg %p621
    $region38: #{unet_downsample_conv.1} parent=5 // pred_check_branch
      %624 = sbr.rel (%p622) target = $region40
    $region39: #{unet_downsample_conv.1} parent=5 // pred_region
      %s625 = ssub.s32 %s9, 2
      // Predicated region
      $region41: #{unet_downsample_conv.1} parent=39 // pred_check
        %p626 = pneg %p144
      $region42: #{unet_downsample_conv.1} parent=39 // pred_check_branch
        %628 = sbr.rel (%p626) target = $region44
      $region43: #{unet_downsample_conv.1} parent=39 // pred_region
        %s629 = smul.u32 8, %s24
        %p630 = scmp.lt.s32.totalorder %s22, 1
        %s631 = scalar_select %p630, %s22, 1
        %p632 = scmp.lt.s32.totalorder %s23, 7
        %s633 = scalar_select %p632, %s23, 7
        %p634 = scmp.lt.s32.totalorder %s629, 7
        %s635 = scalar_select %p634, %s629, 7
        %s636 = smul.addr %s633, 8
        %s637 = sadd.s32 %s635, %s636
        %s638 = smul.addr %s631, 64
        %s639 = sadd.s32 %s637, %s638
        %s640 = smul.addr %s639, 4
        %s641 = scalar_lea.vmem %s3, %s640
      $region44: #{unet_downsample_conv.1} parent=39 // pred_fallthru
        _
    $region40: #{unet_downsample_conv.1} parent=5 // pred_fallthru
      _
  $region6: #{unet_downsample_conv.1} parent=0 // loop_footer
    %s13 = sadd.s32 1, %s9
  $region7: #{unet_downsample_conv.1} parent=0 // loop_footer_branch
    %8 = sbr.rel target = $region3
  $region8: #{unet_downsample_conv.1} parent=0 // loop_exit
    _

</llo_original>
